<compile_context>
chip_gen: v7x
topology: tpu7x:2x2x1
jax: 0.10.0
libtpu: 0.0.40
codegen_flags: <defaults>
</compile_context>

<pallas_src>
import functools

import jax
import jax.numpy as jnp
from jax.experimental import pallas as pl
from jax.experimental.pallas import tpu as pltpu

BN_EPS = 1e-5


@functools.lru_cache(maxsize=None)
def _roll_left_convention():
    """Probe pltpu.roll's rotation direction once with a tiny [8,128] kernel.

    Returns True if roll(x, shift=s) moves element (i+s) to position i
    ("rotate left"); False if it follows jnp.roll semantics (element i moves
    to position i+s).  The main kernel picks its shift amounts accordingly.
    """
    def probe(x_ref, o_ref):
        o_ref[...] = pltpu.roll(x_ref[...], shift=1, axis=1)

    x = jax.lax.broadcasted_iota(jnp.float32, (8, 128), 1)
    out = pl.pallas_call(
        probe, out_shape=jax.ShapeDtypeStruct((8, 128), jnp.float32))(x)
    return bool(out[0, 0] == 1.0)


def _shift_time_left(v, s, roll_left):
    """v[..., t] <- v[..., t + s] (circular; valid wherever t + s < T)."""
    if s == 0:
        return v
    t = v.shape[-1]
    amt = (s if roll_left else t - s) % t
    if amt == 0:
        return v
    return pltpu.roll(v, shift=amt, axis=v.ndim - 1)


def _wavenet_block_kernel(*refs, dilations, filter_len, c_out, roll_left):
    """Fused forward of the whole WaveNetBlock, activations in [B, C, T]."""
    n_layers = len(dilations)
    n_in = 2 + 6 * n_layers
    x_ref, res_ref = refs[0], refs[1]
    p_refs = refs[2:n_in]
    out_ref = refs[n_in]
    x_scr, res_scr = refs[n_in + 1], refs[n_in + 2]

    B, c_in, T = x_ref.shape
    r_feat = res_ref.shape[1]

    # Stage the (f32) activations into VMEM scratch; each layer reads from and
    # writes back to these refs, which bounds live ranges across the unroll.
    x_scr[...] = x_ref[...].astype(jnp.float32)
    res_scr[...] = res_ref[...].astype(jnp.float32)

    lane = jax.lax.broadcasted_iota(jnp.int32, (B, c_in, T), 2)

    t_valid = T
    for li, d in enumerate(dilations):
        (wg_ref, bg_ref, wlr_ref, blr_ref,
         g_ref, b_ref) = p_refs[6 * li:6 * (li + 1)]
        t_out = t_valid - d * (filter_len - 1)
        pad = (t_valid - t_out) // 2

        x = x_scr[...]        # [B, C, T]
        res = res_scr[...]    # [B, R, T]

        # --- BatchNorm1d, training-mode batch stats over the valid lanes ---
        valid = lane < t_valid
        inv_n = 1.0 / float(B * t_valid)
        xm = jnp.where(valid, x, 0.0)
        mean = jnp.sum(jnp.sum(xm, axis=2, keepdims=True),
                       axis=0, keepdims=True) * inv_n             # [1, C, 1]
        xc = jnp.where(valid, x - mean, 0.0)                      # two-pass var
        var = jnp.sum(jnp.sum(xc * xc, axis=2, keepdims=True),
                      axis=0, keepdims=True) * inv_n              # [1, C, 1]
        scale = g_ref[...][None] * jax.lax.rsqrt(var + BN_EPS)    # [1, C, 1]
        bn_shift = b_ref[...][None] - mean * scale
        xn = x * scale + bn_shift                                 # [B, C, T]

        # --- fused (tanh | sigmoid) dilated conv: pure VPU broadcast-FMAs ---
        acc = jnp.zeros((B, 2 * c_out, T), jnp.float32)
        for k in range(filter_len):
            xk = _shift_time_left(xn, k * d, roll_left)           # lane roll
            for c in range(c_in):
                # [B,1,T] (sublane-broadcast) * [1,2O,1] (lane-broadcast)
                acc = acc + xk[:, c:c + 1, :] * wg_ref[k, c][None]
        acc = acc + bg_ref[...][None]                             # bias once

        a_t = acc[:, :c_out, :]
        a_s = acc[:, c_out:, :]
        # sigmoid(z) = 0.5*(tanh(0.5 z)+1): both branches use the EUP tanh.
        gated = jnp.tanh(a_t) * (0.5 * (jnp.tanh(0.5 * a_s) + 1.0))

        # --- fused 1x1 convs (conv_lin | conv_res): VPU broadcast-FMAs ---
        y = jnp.zeros((B, c_out + r_feat, T), jnp.float32)
        for o in range(c_out):
            y = y + gated[:, o:o + 1, :] * wlr_ref[o][None]
        y = y + blr_ref[...][None]

        x_lin = y[:, :c_out, :]
        x_res = y[:, c_out:, :]

        # --- residual adds on the centre crop, expressed as lane rolls ---
        xp = _shift_time_left(xn, pad, roll_left)
        rp = _shift_time_left(res, pad, roll_left)
        x_scr[...] = xp + x_lin
        res_scr[...] = rp + x_res
        t_valid = t_out

    t_final = t_valid
    x_fin = x_scr[...]
    res_fin = res_scr[...]
    out_ref[:, :c_out, :] = x_fin[:, :, :t_final].astype(out_ref.dtype)
    out_ref[:, c_out:, :] = res_fin[:, :, :t_final].astype(out_ref.dtype)


def wavenet_block(x_nct, res_nct, params_list, *, filter_len, dilations):
    """WaveNetBlock forward.  x: [B, C, T], res: [B, R, T] (PyTorch NCT)."""
    B, C, T = x_nct.shape
    R = res_nct.shape[1]
    c_out = params_list[0]["w_t"].shape[-1]
    assert C == c_out, "residual add needs num_features_in == num_features_out"

    t_final = T
    for d in dilations:
        t_final -= d * (filter_len - 1)
    assert t_final > 0, "timesteps too short for these dilations"

    # Host-side branch fusion of the small weights.  The trailing singleton
    # dim puts the output-channel axis on SUBLANES inside the kernel so the
    # per-(tap, channel) weight broadcasts along lanes with no transpose.
    fused = []
    for p in params_list:
        fused += [
            jnp.concatenate([p["w_t"], p["w_s"]], axis=-1)[..., None],      # [K,C,2O,1]
            jnp.concatenate([p["b_t"], p["b_s"]], axis=-1)[:, None],        # [2O,1]
            jnp.concatenate([p["w_lin"], p["w_res"]], axis=-1)[..., None],  # [O,O+R,1]
            jnp.concatenate([p["b_lin"], p["b_res"]], axis=-1)[:, None],    # [O+R,1]
            p["gamma"][:, None], p["beta"][:, None],                        # [C,1]
        ]

    kernel = functools.partial(
        _wavenet_block_kernel, dilations=tuple(dilations),
        filter_len=filter_len, c_out=c_out, roll_left=_roll_left_convention())

    vmem_spec = pl.BlockSpec(memory_space=pltpu.MemorySpace.VMEM)
    inputs = (x_nct, res_nct, *fused)

    # Scoped-VMEM budget: derived from the device's capacity with headroom
    # (never the whole 64 MiB on v7x), floored at a comfortable 16 MiB.
    act_bytes = 4 * B * T * (C + R + 2 * c_out + (c_out + R))
    w_bytes = sum(int(a.size) for a in fused) * 4 * 128   # worst-case lane pad
    try:
        cap = int(pltpu.get_tpu_info().vmem_capacity_bytes)
    except Exception:
        cap = 64 * 2**20
    vmem_limit = int(min(max(6 * act_bytes + 2 * w_bytes, 16 * 2**20),
                         (3 * cap) // 4))

    out = pl.pallas_call(
        kernel,
        out_shape=jax.ShapeDtypeStruct((B, c_out + R, t_final), x_nct.dtype),
        in_specs=[vmem_spec] * len(inputs),
        out_specs=vmem_spec,
        scratch_shapes=[pltpu.VMEM((B, C, T), jnp.float32),
                        pltpu.VMEM((B, R, T), jnp.float32)],
        compiler_params=pltpu.CompilerParams(vmem_limit_bytes=vmem_limit),
    )(*inputs)
    # Single fused writeback from the kernel; split into the module's two
    # outputs here (tiny slices).
    return out[:, :c_out, :], out[:, c_out:, :]


def init_wavenet_conv_params(key, c_in, c_out, r, filter_len):
    """Deterministic synthetic init matching nn.Conv1d / nn.BatchNorm1d shapes."""
    ks = jax.random.split(key, 8)
    b_conv = 1.0 / (c_in * filter_len) ** 0.5
    b_1x1 = 1.0 / c_out ** 0.5
    u = lambda k, s, b: jax.random.uniform(k, s, jnp.float32, -b, b)
    return dict(
        w_t=u(ks[0], (filter_len, c_in, c_out), b_conv),   # conv_tanh [K,C,O]
        b_t=u(ks[1], (c_out,), b_conv),
        w_s=u(ks[2], (filter_len, c_in, c_out), b_conv),   # conv_sig
        b_s=u(ks[3], (c_out,), b_conv),
        w_lin=u(ks[4], (c_out, c_out), b_1x1),             # 1x1 conv_lin
        b_lin=u(ks[5], (c_out,), b_1x1),
        w_res=u(ks[6], (c_out, r), b_1x1),                 # 1x1 conv_res
        b_res=u(ks[7], (r,), b_1x1),
        gamma=jnp.ones((c_in,), jnp.float32),              # BatchNorm defaults
        beta=jnp.zeros((c_in,), jnp.float32),
    )


def _reference_block(x, res, params_list, *, filter_len, dilations):
    """Pure-JAX reference (NCT layout) for correctness checking."""
    for p, d in zip(params_list, dilations):
        B, C, T = x.shape
        t_out = T - d * (filter_len - 1)
        mean = jnp.mean(x, axis=(0, 2), keepdims=True)
        var = jnp.mean((x - mean) ** 2, axis=(0, 2), keepdims=True)
        xn = ((x - mean) * jax.lax.rsqrt(var + BN_EPS)
              * p["gamma"][None, :, None] + p["beta"][None, :, None])
        O = p["w_t"].shape[-1]
        acc_t = jnp.zeros((B, O, t_out)) + p["b_t"][None, :, None]
        acc_s = jnp.zeros((B, O, t_out)) + p["b_s"][None, :, None]
        for k in range(filter_len):
            xs = xn[:, :, k * d:k * d + t_out]
            acc_t = acc_t + jnp.einsum("bct,co->bot", xs, p["w_t"][k])
            acc_s = acc_s + jnp.einsum("bct,co->bot", xs, p["w_s"][k])
        gated = jnp.tanh(acc_t) * jax.nn.sigmoid(acc_s)
        x_lin = jnp.einsum("bot,op->bpt", gated, p["w_lin"]) + p["b_lin"][None, :, None]
        x_res = jnp.einsum("bot,or->brt", gated, p["w_res"]) + p["b_res"][None, :, None]
        pad = (T - t_out) // 2
        x = xn[:, :, pad:pad + t_out] + x_lin
        res = res[:, :, pad:pad + t_out] + x_res
    return x, res


if __name__ == "__main__":
    B, C, R, T = 2, 8, 8, 128           # num_features_in == num_features_out == C
    filter_len = 3
    dilations = [1, 2, 4, 8]

    key = jax.random.PRNGKey(0)
    k_x, k_res, *k_layers = jax.random.split(key, 2 + len(dilations))
    x = jax.random.normal(k_x, (B, C, T), jnp.float32)      # PyTorch NCT layout
    res = jax.random.normal(k_res, (B, R, T), jnp.float32)
    params = [init_wavenet_conv_params(k, C, C, R, filter_len) for k in k_layers]

    x_out, res_out = wavenet_block(x, res, params,
                                   filter_len=filter_len, dilations=dilations)
    jax.block_until_ready((x_out, res_out))

    # Each layer shrinks time by dilation*(filter_len-1).
    t_final = T - (filter_len - 1) * sum(dilations)
    assert x_out.shape == (B, C, t_final)
    assert res_out.shape == (B, R, t_final)

    x_ref, res_ref = _reference_block(x, res, params,
                                      filter_len=filter_len, dilations=dilations)
    assert jnp.allclose(x_out, x_ref, rtol=1e-3, atol=1e-3), \
        float(jnp.max(jnp.abs(x_out - x_ref)))
    assert jnp.allclose(res_out, res_ref, rtol=1e-3, atol=1e-3), \
        float(jnp.max(jnp.abs(res_out - res_ref)))

    print("KERNEL_OK")
</pallas_src>

<mosaic_0001>
module attributes {stable_mosaic.version = 11 : i64} {
  func.func @probe(%arg0: memref<8x128xf32, #tpu.memory_space<vmem>>, %arg1: memref<8x128xf32, #tpu.memory_space<vmem>>) attributes {dimension_semantics = [], scalar_prefetch = 0 : i64, scratch_operands = 0 : i64, tpu.core_type = #tpu.core_type<tc>} {
    %c0 = arith.constant 0 : index
    %c0_0 = arith.constant 0 : index
    %0 = vector.load %arg0[%c0, %c0_0] : memref<8x128xf32, #tpu.memory_space<vmem>>, vector<8x128xf32>
    %c1_i32 = arith.constant 1 : i32
    %1 = tpu.dynamic_rotate %0 by %c1_i32 dim 1 : vector<8x128xf32>, i32 -> vector<8x128xf32>
    %c0_1 = arith.constant 0 : index
    %c0_2 = arith.constant 0 : index
    %2 = vector.load %arg1[%c0_1, %c0_2] : memref<8x128xf32, #tpu.memory_space<vmem>>, vector<8x128xf32>
    tpu.vector_store %arg1[%c0_1, %c0_2], %1 {strides = array<i32>} : memref<8x128xf32, #tpu.memory_space<vmem>>, vector<8x128xf32>,
    return
  }
}

</mosaic_0001>

<llo_original>
// kernel: tpu_custom_call.1
$region0: #{tpu_custom_call.1}
  #allocation0 [shape = 'u32[]', space=smem, size = 0x4, offset = 0x4, fixed_abs, tag = 'smem constant byte address 0x4 - core index']
  #allocation1 [shape = 'u32[144,128]{1,0:T(1,128)}', space=vmem, size = 0x12000, scoped, tag = 'internal scratch']
  %s0 = inlined_call_operand.hbm [shape: f32[8,128], index: 0, kind: input, shape index: {}]
  %s1 = inlined_call_operand.hbm [shape: f32[8,128], index: 1, kind: output, shape index: {}]
  %s2 = sld [smem:[#allocation0]]
  $region18: #{tpu_custom_call.1} parent=0
    _
  %s4 = ssub.s32 1, %s2
  %s5 = scalar_select 0, %s4, %s2
  $region1: #{tpu_custom_call.1} parent=0
    #allocation2 [shape = 'u8[4096]{0}', space=vmem, size = 0x1000, scoped, tag = 'input window, operand 0, single buffered']
    #allocation3 [shape = 's32[1]{0}', space=sflag, size = 0x4, scoped, tag = 'scoped memory for tpu_custom_call.1']
    #allocation4 [shape = 's32[1]{0}', space=sflag, size = 0x4, scoped, tag = 'scoped memory for tpu_custom_call.1']
    #allocation5 [shape = 'u8[4096]{0}', space=vmem, size = 0x1000, scoped, tag = 'output window, operand 0, single buffered']
    %6 = vsyncpa [#allocation3], 0
    %7 = vsyncpa [#allocation4], 0
    // Predicated region
    $region2: #{tpu_custom_call.1} parent=1 // pred_check
      _
    $region3: #{tpu_custom_call.1} parent=1 // pred_check_branch
      %9 = sbr.rel (0) target = $region5
    $region4: #{tpu_custom_call.1} parent=1 // pred_region
      %s11 = ssub.s32 128, 128
      %12 = vsyncadd [#allocation3], %s11
      %s14 = sshll.u32 [#allocation2], 4
      %s15 = int_to_ptr.vmem [resolvable:$true] %s14
      %17 = dma.hbm_to_vmem [thread:$0]  %s0, 128, %s15, [#allocation3]
    $region5: #{tpu_custom_call.1} parent=1 // pred_fallthru
      _
    // Predicated region
    $region6: #{tpu_custom_call.1} parent=1 // pred_check
      _
    $region7: #{tpu_custom_call.1} parent=1 // pred_check_branch
      %19 = sbr.rel (0) target = $region9
    $region8: #{tpu_custom_call.1} parent=1 // pred_region
      %20 = dma.done [#allocation3], 128
    $region9: #{tpu_custom_call.1} parent=1 // pred_fallthru
      _
    %v21 = vld [vmem:[#allocation2] sm:$0xff]
    %22 = vrot.lane.b32.xlu0 %v21, 1
    %v23 = vpop.permute.xlu0 %22
    %24 = vst [vmem:[#allocation5] sm:$0xff] %v23
    // Predicated region
    $region10: #{tpu_custom_call.1} parent=1 // pred_check
      _
    $region11: #{tpu_custom_call.1} parent=1 // pred_check_branch
      %26 = sbr.rel (0) target = $region13
    $region12: #{tpu_custom_call.1} parent=1 // pred_region
      %s28 = ssub.s32 128, 128
      %29 = vsyncadd [#allocation4], %s28
      %s31 = sshll.u32 [#allocation5], 4
      %s32 = int_to_ptr.vmem [resolvable:$true] %s31
      %34 = dma.vmem_to_hbm [thread:$0]  %s32, 128, %s1, [#allocation4]
    $region13: #{tpu_custom_call.1} parent=1 // pred_fallthru
      _
    // Predicated region
    $region14: #{tpu_custom_call.1} parent=1 // pred_check
      _
    $region15: #{tpu_custom_call.1} parent=1 // pred_check_branch
      %36 = sbr.rel (0) target = $region17
    $region16: #{tpu_custom_call.1} parent=1 // pred_region
      %37 = dma.done [#allocation4], 128
    $region17: #{tpu_custom_call.1} parent=1 // pred_fallthru
      _
    %38 = vsyncpa [#allocation3], 1
    %39 = vsyncpa [#allocation4], 1

</llo_original>
